<compile_context>
chip_gen: v6e
topology: v6e:2x2x1
jax: 0.10.0
libtpu: 0.0.40
codegen_flags: <defaults>
</compile_context>

<pallas_src>
import functools

import jax
import jax.numpy as jnp
from jax.experimental import pallas as pl
from jax.experimental.pallas import tpu as pltpu

# beta from the PyTorch module.
_BETA = (1.0, 0.5, 1.0, 0.5, 1.0, 1.0)


def _edram_loss_kernel(logp_ref, loc_est_ref, loc_true_ref, target_ref, beta_ref,
                       out_ref, acc_ref, *, B, TB, T, masked):
    t = pl.program_id(1)

    @pl.when(t == 0)
    def _init():
        acc_ref[...] = jnp.zeros_like(acc_ref)

    # Cast AFTER the DMA so bf16/f16 inputs travel narrow over HBM.
    logits = logp_ref[...].astype(jnp.float32)                    # (TB, C)
    diff = (loc_est_ref[...].astype(jnp.float32)
            - loc_true_ref[...].astype(jnp.float32))              # (TB, 6)
    tgt = target_ref[...]                                         # (TB, 1) int32
    beta = beta_ref[...]                                          # (1, 6) f32

    if masked:
        p = pl.program_id(0)
        row0 = (p * T + t) * TB
        rows = row0 + jax.lax.broadcasted_iota(jnp.int32, (TB, 1), 0)
        valid = rows < B                                          # (TB, 1)
        # Zero padded rows *before* any nonlinear op so exp/log stay finite.
        logits = jnp.where(valid, logits, 0.0)
        diff = jnp.where(valid, diff, 0.0)

    # ---- loss_where: weighted squared location error (VPU/XLU only) ----
    loss_where = jnp.sum(diff * diff * beta, axis=-1, keepdims=True)      # (TB, 1)

    # ---- loss_what: cross entropy with internal (max-stabilized) log_softmax ----
    m = jnp.max(logits, axis=-1, keepdims=True)                           # (TB, 1)
    lse = m + jnp.log(jnp.sum(jnp.exp(logits - m), axis=-1, keepdims=True))
    col = jax.lax.broadcasted_iota(jnp.int32, logits.shape, 1)
    picked = jnp.sum(jnp.where(col == tgt, logits, 0.0), axis=-1, keepdims=True)
    ce = lse - picked                                                     # (TB, 1)

    per_row = loss_where + ce
    if masked:
        per_row = jnp.where(valid, per_row, 0.0)

    acc_ref[...] += jnp.sum(per_row, axis=0, keepdims=True)               # (1, 1)

    @pl.when(t == T - 1)
    def _finalize():
        out_ref[...] = (acc_ref[...] * jnp.float32(1.0 / B)).reshape(out_ref.shape)


def edram_loss(log_probas, loc_estimate, target, loc_true,
               *, max_rows_per_tile=256, tile_budget_bytes=8 << 20):
    """Pallas forward of EDRAM_Loss. Returns a scalar f32 loss."""
    B, C = log_probas.shape
    L = loc_estimate.shape[1]
    assert loc_estimate.shape == (B, L) and loc_true.shape == (B, L)
    assert L == len(_BETA)

    target2d = target.reshape(B, 1).astype(jnp.int32)
    beta2d = jnp.asarray(_BETA, dtype=jnp.float32).reshape(1, L)

    # --- batch tile: multiple of 8 (or the full B), sized against VMEM budget ---
    itemsize = jnp.dtype(log_probas.dtype).itemsize
    if B <= max_rows_per_tile:
        TB = B                      # block == full batch dim (always legal)
    else:
        TB = max_rows_per_tile
        while TB > 8 and TB * C * itemsize > tile_budget_bytes:
            TB //= 2

    NB = pl.cdiv(B, TB)             # total batch tiles
    # Split across TensorCores (v7x megacore) when it divides evenly.
    # Only the globally-last tile may then be a partial (masked) tile.
    P = 2 if (NB % 2 == 0 and NB >= 2) else 1
    T = NB // P
    masked = (B % TB) != 0

    kernel = functools.partial(_edram_loss_kernel, B=B, TB=TB, T=T, masked=masked)
    row_map = lambda p, t: (p * T + t, 0)

    out = pl.pallas_call(
        kernel,
        out_shape=jax.ShapeDtypeStruct((P, 1, 1), jnp.float32),
        grid_spec=pltpu.PrefetchScalarGridSpec(
            num_scalar_prefetch=0,
            grid=(P, T),
            in_specs=[
                pl.BlockSpec((TB, C), row_map),            # logits, native dtype
                pl.BlockSpec((TB, L), row_map),            # loc_estimate
                pl.BlockSpec((TB, L), row_map),            # loc_true
                pl.BlockSpec((TB, 1), row_map),            # target (int32)
                pl.BlockSpec((1, L), lambda p, t: (0, 0)),  # beta (resident)
            ],
            out_specs=pl.BlockSpec((1, 1, 1), lambda p, t: (p, 0, 0)),
            scratch_shapes=[pltpu.VMEM((1, 1), jnp.float32)],
        ),
        compiler_params=pltpu.CompilerParams(
            dimension_semantics=("parallel", "arbitrary")),
    )(log_probas, loc_estimate, loc_true, target2d, beta2d)

    # Each per-split partial is already divided by B; sum of partials == mean.
    return jnp.sum(out)


def edram_loss_ref(log_probas, loc_estimate, target, loc_true):
    """Pure-JAX reference mirroring the PyTorch module."""
    beta = jnp.array(_BETA, dtype=jnp.float32)[:, None]
    lp = log_probas.astype(jnp.float32)
    le = loc_estimate.astype(jnp.float32)
    lt = loc_true.astype(jnp.float32)
    loss_where = ((le - lt) ** 2) @ beta                       # (B, 1)
    t = target.reshape(-1).astype(jnp.int32)
    logp = jax.nn.log_softmax(lp, axis=-1)
    loss_what = -jnp.mean(jnp.take_along_axis(logp, t[:, None], axis=-1))
    return jnp.mean(loss_where + loss_what)


def _make_inputs(key, B, C, dtype=jnp.float32):
    k1, k2, k3, k4 = jax.random.split(key, 4)
    log_probas = jax.random.normal(k1, (B, C), dtype=jnp.float32).astype(dtype)
    loc_estimate = jax.random.normal(k2, (B, 6), dtype=jnp.float32).astype(dtype)
    loc_true = jax.random.normal(k3, (B, 6), dtype=jnp.float32).astype(dtype)
    target = jax.random.randint(k4, (B, 1), 0, C, dtype=jnp.int32)
    return log_probas, loc_estimate, target, loc_true


if __name__ == "__main__":
    key = jax.random.PRNGKey(0)

    # --- test 1: small shapes, single tile (grid = (1, 1)) ---
    lp, le, tg, lt = _make_inputs(key, B=8, C=16)
    loss = jax.block_until_ready(edram_loss(lp, le, tg, lt))
    ref = jax.block_until_ready(edram_loss_ref(lp, le, tg, lt))
    assert jnp.allclose(loss, ref, rtol=1e-4, atol=1e-5), (loss, ref)

    # --- test 2: multi-step accumulator + masked tail (grid = (1, 5)) ---
    lp, le, tg, lt = _make_inputs(jax.random.PRNGKey(1), B=260, C=128)
    loss = jax.block_until_ready(edram_loss(lp, le, tg, lt, max_rows_per_tile=64))
    ref = jax.block_until_ready(edram_loss_ref(lp, le, tg, lt))
    assert jnp.allclose(loss, ref, rtol=1e-4, atol=1e-5), (loss, ref)

    # --- test 3: two-way parallel split, bf16 inputs over the wire (grid = (2, 2)) ---
    lp, le, tg, lt = _make_inputs(jax.random.PRNGKey(2), B=256, C=128,
                                  dtype=jnp.bfloat16)
    loss = jax.block_until_ready(edram_loss(lp, le, tg, lt, max_rows_per_tile=64))
    ref = jax.block_until_ready(edram_loss_ref(lp, le, tg, lt))
    assert jnp.allclose(loss, ref, rtol=1e-3, atol=1e-3), (loss, ref)

    print("KERNEL_OK")
</pallas_src>

<mosaic_0001>
module attributes {stable_mosaic.version = 11 : i64} {
  func.func @_edram_loss_kernel(%arg0: i32, %arg1: i32, %arg2: memref<8x16xf32, #tpu.memory_space<vmem>>, %arg3: memref<8x6xf32, #tpu.memory_space<vmem>>, %arg4: memref<8x6xf32, #tpu.memory_space<vmem>>, %arg5: memref<8x1xi32, #tpu.memory_space<vmem>>, %arg6: memref<1x6xf32, #tpu.memory_space<vmem>>, %arg7: memref<1x1x1xf32, #tpu.memory_space<vmem>>, %arg8: memref<1x1xf32, #tpu.memory_space<vmem>>) attributes {dimension_semantics = [#tpu.dimension_semantics<parallel>, #tpu.dimension_semantics<arbitrary>], iteration_bounds = array<i64: 1, 1>, scalar_prefetch = 0 : i64, scratch_operands = 1 : i64, tpu.core_type = #tpu.core_type<tc>, window_params = [{transform_indices = @transform_0, window_bounds = array<i64: 8, 16>}, {transform_indices = @transform_1, window_bounds = array<i64: 8, 6>}, {transform_indices = @transform_2, window_bounds = array<i64: 8, 6>}, {transform_indices = @transform_3, window_bounds = array<i64: 8, 1>}, {pipeline_mode = #tpu.pipeline_mode<synchronous>, transform_indices = @transform_4, window_bounds = array<i64: 1, 6>}, {transform_indices = @transform_5, window_bounds = array<i64: 1, 1, 1>}]} {
    %c0_i32 = arith.constant 0 : i32
    %0 = arith.cmpi eq, %arg1, %c0_i32 : i32
    %1 = arith.extui %0 : i1 to i32
    %c0_i32_0 = arith.constant 0 : i32
    %2 = arith.cmpi ne, %1, %c0_i32_0 : i32
    scf.if %2 {
      %cst_21 = arith.constant 0.000000e+00 : f32
      %40 = vector.broadcast %cst_21 : f32 to vector<1x1xf32>
      %c0_22 = arith.constant 0 : index
      %c0_23 = arith.constant 0 : index
      %41 = vector.load %arg8[%c0_22, %c0_23] : memref<1x1xf32, #tpu.memory_space<vmem>>, vector<1x1xf32>
      tpu.vector_store %arg8[%c0_22, %c0_23], %40 {strides = array<i32>} : memref<1x1xf32, #tpu.memory_space<vmem>>, vector<1x1xf32>,
    } else {
    }
    %c0 = arith.constant 0 : index
    %c0_1 = arith.constant 0 : index
    %3 = vector.load %arg2[%c0, %c0_1] : memref<8x16xf32, #tpu.memory_space<vmem>>, vector<8x16xf32>
    %c0_2 = arith.constant 0 : index
    %c0_3 = arith.constant 0 : index
    %4 = vector.load %arg3[%c0_2, %c0_3] : memref<8x6xf32, #tpu.memory_space<vmem>>, vector<8x6xf32>
    %c0_4 = arith.constant 0 : index
    %c0_5 = arith.constant 0 : index
    %5 = vector.load %arg4[%c0_4, %c0_5] : memref<8x6xf32, #tpu.memory_space<vmem>>, vector<8x6xf32>
    %6 = arith.subf %4, %5 : vector<8x6xf32>
    %c0_6 = arith.constant 0 : index
    %c0_7 = arith.constant 0 : index
    %7 = vector.load %arg5[%c0_6, %c0_7] : memref<8x1xi32, #tpu.memory_space<vmem>>, vector<8x1xi32>
    %c0_8 = arith.constant 0 : index
    %c0_9 = arith.constant 0 : index
    %8 = vector.load %arg6[%c0_8, %c0_9] : memref<1x6xf32, #tpu.memory_space<vmem>>, vector<1x6xf32>
    %9 = arith.mulf %6, %6 : vector<8x6xf32>
    %10 = vector.broadcast %8 : vector<1x6xf32> to vector<8x6xf32>
    %11 = arith.mulf %9, %10 : vector<8x6xf32>
    %cst = arith.constant dense<0.000000e+00> : vector<8xf32>
    %12 = vector.multi_reduction <add>, %11, %cst [1] : vector<8x6xf32> to vector<8xf32>
    %13 = vector.shape_cast %12 : vector<8xf32> to vector<8x1xf32>
    %cst_10 = arith.constant dense<0xFF800000> : vector<8xf32>
    %14 = vector.multi_reduction <maximumf>, %3, %cst_10 [1] : vector<8x16xf32> to vector<8xf32>
    %15 = vector.shape_cast %14 : vector<8xf32> to vector<8x1xf32>
    %16 = vector.broadcast %15 : vector<8x1xf32> to vector<8x16xf32>
    %17 = arith.subf %3, %16 : vector<8x16xf32>
    %18 = math.exp %17 : vector<8x16xf32>
    %cst_11 = arith.constant dense<0.000000e+00> : vector<8xf32>
    %19 = vector.multi_reduction <add>, %18, %cst_11 [1] : vector<8x16xf32> to vector<8xf32>
    %20 = vector.shape_cast %19 : vector<8xf32> to vector<8x1xf32>
    %21 = math.log %20 : vector<8x1xf32>
    %22 = arith.addf %15, %21 : vector<8x1xf32>
    %23 = tpu.iota {dimensions = array<i32: 1>} : vector<8x16xi32>
    %24 = vector.broadcast %7 : vector<8x1xi32> to vector<8x16xi32>
    %25 = arith.cmpi eq, %23, %24 : vector<8x16xi32>
    %cst_12 = arith.constant 0.000000e+00 : f32
    %26 = vector.broadcast %cst_12 : f32 to vector<8x16xf32>
    %27 = arith.select %25, %3, %26 : vector<8x16xi1>, vector<8x16xf32>
    %cst_13 = arith.constant dense<0.000000e+00> : vector<8xf32>
    %28 = vector.multi_reduction <add>, %27, %cst_13 [1] : vector<8x16xf32> to vector<8xf32>
    %29 = vector.shape_cast %28 : vector<8xf32> to vector<8x1xf32>
    %30 = arith.subf %22, %29 : vector<8x1xf32>
    %31 = arith.addf %13, %30 : vector<8x1xf32>
    %c0_14 = arith.constant 0 : index
    %c0_15 = arith.constant 0 : index
    %32 = vector.load %arg8[%c0_14, %c0_15] : memref<1x1xf32, #tpu.memory_space<vmem>>, vector<1x1xf32>
    %cst_16 = arith.constant dense<0.000000e+00> : vector<1xf32>
    %33 = vector.multi_reduction <add>, %31, %cst_16 [0] : vector<8x1xf32> to vector<1xf32>
    %34 = vector.shape_cast %33 : vector<1xf32> to vector<1x1xf32>
    %35 = arith.addf %32, %34 : vector<1x1xf32>
    %c0_17 = arith.constant 0 : index
    %c0_18 = arith.constant 0 : index
    %36 = vector.load %arg8[%c0_17, %c0_18] : memref<1x1xf32, #tpu.memory_space<vmem>>, vector<1x1xf32>
    tpu.vector_store %arg8[%c0_17, %c0_18], %35 {strides = array<i32>} : memref<1x1xf32, #tpu.memory_space<vmem>>, vector<1x1xf32>,
    %c0_i32_19 = arith.constant 0 : i32
    %37 = arith.cmpi eq, %arg1, %c0_i32_19 : i32
    %38 = arith.extui %37 : i1 to i32
    %c0_i32_20 = arith.constant 0 : i32
    %39 = arith.cmpi ne, %38, %c0_i32_20 : i32
    scf.if %39 {
      %c0_21 = arith.constant 0 : index
      %c0_22 = arith.constant 0 : index
      %40 = vector.load %arg8[%c0_21, %c0_22] : memref<1x1xf32, #tpu.memory_space<vmem>>, vector<1x1xf32>
      %cst_23 = arith.constant 1.250000e-01 : f32
      %41 = vector.broadcast %cst_23 : f32 to vector<1x1xf32>
      %42 = arith.mulf %40, %41 : vector<1x1xf32>
      %43 = vector.shape_cast %42 : vector<1x1xf32> to vector<1x1x1xf32>
      %c0_24 = arith.constant 0 : index
      %c0_25 = arith.constant 0 : index
      %c0_26 = arith.constant 0 : index
      %44 = vector.load %arg7[%c0_24, %c0_25, %c0_26] : memref<1x1x1xf32, #tpu.memory_space<vmem>>, vector<1x1x1xf32>
      tpu.vector_store %arg7[%c0_24, %c0_25, %c0_26], %43 {strides = array<i32>} : memref<1x1x1xf32, #tpu.memory_space<vmem>>, vector<1x1x1xf32>,
    } else {
    }
    return
  }
  func.func @transform_0(%arg0: i32, %arg1: i32) -> (i32, i32) {
    %c1_i32 = arith.constant 1 : i32
    %0 = arith.muli %arg0, %c1_i32 : i32
    %1 = arith.addi %0, %arg1 : i32
    %c0_i32 = arith.constant 0 : i32
    %c0_i32_0 = arith.constant 0 : i32
    return %1, %c0_i32 : i32, i32
  }
  func.func @transform_1(%arg0: i32, %arg1: i32) -> (i32, i32) {
    %c1_i32 = arith.constant 1 : i32
    %0 = arith.muli %arg0, %c1_i32 : i32
    %1 = arith.addi %0, %arg1 : i32
    %c0_i32 = arith.constant 0 : i32
    %c0_i32_0 = arith.constant 0 : i32
    return %1, %c0_i32 : i32, i32
  }
  func.func @transform_2(%arg0: i32, %arg1: i32) -> (i32, i32) {
    %c1_i32 = arith.constant 1 : i32
    %0 = arith.muli %arg0, %c1_i32 : i32
    %1 = arith.addi %0, %arg1 : i32
    %c0_i32 = arith.constant 0 : i32
    %c0_i32_0 = arith.constant 0 : i32
    return %1, %c0_i32 : i32, i32
  }
  func.func @transform_3(%arg0: i32, %arg1: i32) -> (i32, i32) {
    %c1_i32 = arith.constant 1 : i32
    %0 = arith.muli %arg0, %c1_i32 : i32
    %1 = arith.addi %0, %arg1 : i32
    %c0_i32 = arith.constant 0 : i32
    %c0_i32_0 = arith.constant 0 : i32
    return %1, %c0_i32 : i32, i32
  }
  func.func @transform_4(%arg0: i32, %arg1: i32) -> (i32, i32) {
    %c0_i32 = arith.constant 0 : i32
    %c0_i32_0 = arith.constant 0 : i32
    %c0_i32_1 = arith.constant 0 : i32
    return %c0_i32, %c0_i32_0 : i32, i32
  }
  func.func @transform_5(%arg0: i32, %arg1: i32) -> (i32, i32, i32) {
    %c0_i32 = arith.constant 0 : i32
    %c0_i32_0 = arith.constant 0 : i32
    %c0_i32_1 = arith.constant 0 : i32
    return %arg0, %c0_i32, %c0_i32_0 : i32, i32, i32
  }
}

</mosaic_0001>

<llo_original>
// kernel: tpu_custom_call.1
$region0: #{tpu_custom_call.1}
  #allocation0 [shape = 'u32[]', space=smem, size = 0x4, offset = 0x4, fixed_abs, tag = 'smem constant byte address 0x4 - core index']
  #allocation1 [shape = 'u32[144,128]{1,0:T(1,128)}', space=vmem, size = 0x12000, scoped, tag = 'internal scratch']
  #allocation2 [shape = 'f32[1,1]{1,0:T(1,128)}', space=vmem, size = 0x200, scoped, tag = 'scratch operand']
  %s0 = inlined_call_operand.vmem [shape: f32[8,16], index: 0, kind: input, shape index: {}]
  %s1 = inlined_call_operand.hbm [shape: f32[8,6], index: 1, kind: input, shape index: {}]
  %s2 = inlined_call_operand.hbm [shape: f32[8,6], index: 2, kind: input, shape index: {}]
  %s3 = inlined_call_operand.vmem [shape: s32[8,1], index: 3, kind: input, shape index: {}]
  %s4 = inlined_call_operand.vmem [shape: f32[1,6], index: 4, kind: input, shape index: {}]
  %s5 = inlined_call_operand.hbm [shape: f32[1,1,1], index: 5, kind: output, shape index: {}]
  %s6 = sld [smem:[#allocation0]]
  $region46: #{tpu_custom_call.1} parent=0
    _
  %s8 = ssub.s32 1, %s6
  %s9 = scalar_select 0, %s8, %s6
  $region1: #{tpu_custom_call.1} parent=0
    #allocation3 [shape = 'u8[4096]{0}', space=vmem, size = 0x1000, scoped, tag = 'input window, operand 1, single buffered']
    #allocation4 [shape = 's32[1]{0}', space=sflag, size = 0x4, scoped, tag = 'scoped memory for tpu_custom_call.1']
    #allocation5 [shape = 's32[1]{0}', space=sflag, size = 0x4, scoped, tag = 'scoped memory for tpu_custom_call.1']
    #allocation6 [shape = 'u8[4096]{0}', space=vmem, size = 0x1000, scoped, tag = 'input window, operand 2, single buffered']
    #allocation7 [shape = 's32[1]{0}', space=sflag, size = 0x4, scoped, tag = 'scoped memory for tpu_custom_call.1']
    #allocation8 [shape = 'u8[512]{0}', space=vmem, size = 0x400, scoped, tag = 'output window, operand 0, single buffered']
    %10 = vsyncpa [#allocation4], 0
    %11 = vsyncpa [#allocation7], 0
    %12 = vsyncpa [#allocation5], 0
    // Predicated region
    $region2: #{tpu_custom_call.1} parent=1 // pred_check
      _
    $region3: #{tpu_custom_call.1} parent=1 // pred_check_branch
      %14 = sbr.rel (0) target = $region5
    $region4: #{tpu_custom_call.1} parent=1 // pred_region
      %s15 = sadd.s32 0, 0
      %p16 = scmp.lt.s32.totalorder %s15, 0
      %s17 = scalar_select %p16, %s15, 0
      %s18 = smul.addr %s17, 8
      %s19 = scalar_lea.vmem %s0, %s18
      %s20 = sadd.s32 0, 0
    $region5: #{tpu_custom_call.1} parent=1 // pred_fallthru
      _
    // Predicated region
    $region6: #{tpu_custom_call.1} parent=1 // pred_check
      _
    $region7: #{tpu_custom_call.1} parent=1 // pred_check_branch
      %22 = sbr.rel (0) target = $region9
    $region8: #{tpu_custom_call.1} parent=1 // pred_region
      %s23 = sadd.s32 0, 0
      %s25 = ssub.s32 128, 128
      %26 = vsyncadd [#allocation4], %s25
      %s27 = smul.addr %s23, 128
      %s28 = scalar_lea.hbm %s1, %s27
      %s30 = sshll.u32 [#allocation3], 4
      %s31 = int_to_ptr.vmem [resolvable:$true] %s30
      %33 = dma.hbm_to_vmem [thread:$0]  %s28, 128, %s31, [#allocation4]
    $region9: #{tpu_custom_call.1} parent=1 // pred_fallthru
      _
    // Predicated region
    $region10: #{tpu_custom_call.1} parent=1 // pred_check
      _
    $region11: #{tpu_custom_call.1} parent=1 // pred_check_branch
      %35 = sbr.rel (0) target = $region13
    $region12: #{tpu_custom_call.1} parent=1 // pred_region
      %s36 = sadd.s32 0, 0
      %s38 = ssub.s32 128, 128
      %39 = vsyncadd [#allocation7], %s38
      %s40 = smul.addr %s36, 128
      %s41 = scalar_lea.hbm %s2, %s40
      %s43 = sshll.u32 [#allocation6], 4
      %s44 = int_to_ptr.vmem [resolvable:$true] %s43
      %46 = dma.hbm_to_vmem [thread:$0]  %s41, 128, %s44, [#allocation7]
    $region13: #{tpu_custom_call.1} parent=1 // pred_fallthru
      _
    // Predicated region
    $region14: #{tpu_custom_call.1} parent=1 // pred_check
      _
    $region15: #{tpu_custom_call.1} parent=1 // pred_check_branch
      %48 = sbr.rel (0) target = $region17
    $region16: #{tpu_custom_call.1} parent=1 // pred_region
      %s49 = sadd.s32 0, 0
      %p50 = scmp.lt.s32.totalorder %s49, 0
      %s51 = scalar_select %p50, %s49, 0
      %s52 = smul.addr %s51, 8
      %s53 = scalar_lea.vmem %s3, %s52
      %s54 = sadd.s32 0, 0
    $region17: #{tpu_custom_call.1} parent=1 // pred_fallthru
      _
    // Predicated region
    $region18: #{tpu_custom_call.1} parent=1 // pred_check
      _
    $region19: #{tpu_custom_call.1} parent=1 // pred_check_branch
      %56 = sbr.rel (0) target = $region21
    $region20: #{tpu_custom_call.1} parent=1 // pred_region
      _
    $region21: #{tpu_custom_call.1} parent=1 // pred_fallthru
      _
    // Predicated region
    $region22: #{tpu_custom_call.1} parent=1 // pred_check
      _
    $region23: #{tpu_custom_call.1} parent=1 // pred_check_branch
      %58 = sbr.rel (0) target = $region25
    $region24: #{tpu_custom_call.1} parent=1 // pred_region
      %59 = dma.done [#allocation4], 128
    $region25: #{tpu_custom_call.1} parent=1 // pred_fallthru
      _
    // Predicated region
    $region26: #{tpu_custom_call.1} parent=1 // pred_check
      _
    $region27: #{tpu_custom_call.1} parent=1 // pred_check_branch
      %61 = sbr.rel (0) target = $region29
    $region28: #{tpu_custom_call.1} parent=1 // pred_region
      %62 = dma.done [#allocation7], 128
    $region29: #{tpu_custom_call.1} parent=1 // pred_fallthru
      _
    %s63 = sadd.s32 0, 0
    %p64 = scmp.lt.s32.totalorder %s63, 0
    %s65 = scalar_select %p64, %s63, 0
    %s66 = smul.addr %s65, 8
    %s67 = scalar_lea.vmem %s0, %s66
    %s68 = sadd.s32 0, 0
    %p69 = scmp.lt.s32.totalorder %s68, 0
    %s70 = scalar_select %p69, %s68, 0
    %s71 = smul.addr %s70, 8
    %s72 = scalar_lea.vmem %s3, %s71
    %s73 = sadd.s32 0, 0
    %p74 = scmp.lt.s32.totalorder %s73, 0
    %s75 = scalar_select %p74, %s73, 0
    %s76 = smul.addr %s75, 8
    %s77 = scalar_lea.vmem %s0, %s76
    %s78 = sadd.s32 0, 0
    %s79 = sadd.s32 0, 0
    %s80 = sadd.s32 0, 0
    %s81 = sadd.s32 0, 0
    %p82 = scmp.lt.s32.totalorder %s81, 0
    %s83 = scalar_select %p82, %s81, 0
    %s84 = smul.addr %s83, 8
    %s85 = scalar_lea.vmem %s3, %s84
    %s86 = sadd.s32 0, 0
    %p87 = scmp.eq.s32.totalorder 0, 0
    // Predicated region
    $region30: #{tpu_custom_call.1} parent=1 // pred_check
      %p88 = pneg %p87
    $region31: #{tpu_custom_call.1} parent=1 // pred_check_branch
      %90 = sbr.rel (%p88) target = $region33
    $region32: #{tpu_custom_call.1} parent=1 // pred_region
      %vm91 = vcmask 0
      %92 = vst.msk [vmem:[#allocation2] sm:$0x1] %vm91, 0.0
    $region33: #{tpu_custom_call.1} parent=1 // pred_fallthru
      _
    %v93 = vld [vmem:[%s77] sm:$0xff]
    %v94 = vld [vmem:[#allocation3] sm:$0xff]
    %v95 = vld [vmem:[#allocation6] sm:$0xff]
    %v96 = vsub.f32 %v94, %v95
    %v97 = vld [vmem:[%s85] sm:$0xff]
    %v98 = vld [vmem:[%s4] sm:$0x1]
    %v99 = vmul.f32 %v96, %v96
    %v101 = vlaneseq
    %v102 = vshrl.u32 %v101, 7
    %v103 = vsub.s32 0, %v102
    %v104 = vrot.slane %v98, %v103
    %v106 = vmul.f32 %v99, %v104
    %vm107 = vcmask 48128
    %v108 = vsel %vm107, %v106, 0.0
    %109 = vadd.xlane.f32.xlu0 %v108
    %v110 = vpop.xlane.xlu0 %109
    %vm111 = vcmask 130048
    %v112 = vsel %vm111, %v93, -inf
    %113 = vmax.xlane.f32.xlu0 %v112
    %v114 = vpop.xlane.xlu0 %113
    %v115 = vsub.f32 %v93, %v114
    %v116 = vmul.f32 %v115, 1.442695
    %v117 = vpow.pop %v116
    %v118 = vsel %vm111, %v117, 0.0
    %119 = vadd.xlane.f32.xlu0 %v118
    %v120 = vpop.xlane.xlu0 %119
    %v121 = vlog2.pop %v120
    %v122 = vmul.f32 %v121, 0.6931472
    %v123 = vadd.f32 %v114, %v122
    %v124 = vlaneseq
    %v125 = vand.u32 %v124, 127
    %126 = vset.pattern.permute.xlu0 0
    %127 = vperm.xlu0 %126, %v97
    %v128 = vpop.permute.xlu0 %127
    %vm129 = vcmp.eq.s32.totalorder %v125, %v128
    %v130 = vsel %vm129, %v93, 0.0
    %v131 = vsel %vm111, %v130, 0.0
    %132 = vadd.xlane.f32.xlu0 %v131
    %v133 = vpop.xlane.xlu0 %132
    %v134 = vsub.f32 %v123, %v133
    %v135 = vadd.f32 %v110, %v134
    %v136 = vld [vmem:[#allocation2] sm:$0x1]
    %v137 = vrot.slane %v135, 4
    %v138 = vadd.f32 %v135, %v137
    %v139 = vrot.slane %v138, 2
    %v140 = vadd.f32 %v138, %v139
    %v141 = vrot.slane %v140, 1
    %v142 = vadd.f32 %v140, %v141
    %v143 = vadd.f32 %v136, %v142
    %vm144 = vcmask 0
    %145 = vst.msk [vmem:[#allocation2] sm:$0x1] %vm144, %v143
    // Predicated region
    $region34: #{tpu_custom_call.1} parent=1 // pred_check
      %p146 = pneg %p87
    $region35: #{tpu_custom_call.1} parent=1 // pred_check_branch
      %148 = sbr.rel (%p146) target = $region37
    $region36: #{tpu_custom_call.1} parent=1 // pred_region
      %v149 = vld [vmem:[#allocation2] sm:$0x1]
      %v150 = vmul.f32 %v149, 0.125
      %151 = vst.msk [vmem:[#allocation8] sm:$0x1] %vm144, %v150
    $region37: #{tpu_custom_call.1} parent=1 // pred_fallthru
      _
    // Predicated region
    $region38: #{tpu_custom_call.1} parent=1 // pred_check
      _
    $region39: #{tpu_custom_call.1} parent=1 // pred_check_branch
      %153 = sbr.rel (0) target = $region41
    $region40: #{tpu_custom_call.1} parent=1 // pred_region
      %s155 = ssub.s32 16, 16
      %156 = vsyncadd [#allocation5], %s155
      %s158 = sshll.u32 [#allocation8], 4
      %s159 = int_to_ptr.vmem [resolvable:$true] %s158
      %161 = dma.vmem_to_hbm [thread:$0]  %s159, 16, %s5, [#allocation5]
    $region41: #{tpu_custom_call.1} parent=1 // pred_fallthru
      _
    // Predicated region
    $region42: #{tpu_custom_call.1} parent=1 // pred_check
      _
    $region43: #{tpu_custom_call.1} parent=1 // pred_check_branch
      %163 = sbr.rel (0) target = $region45
    $region44: #{tpu_custom_call.1} parent=1 // pred_region
      %164 = dma.done [#allocation5], 16
    $region45: #{tpu_custom_call.1} parent=1 // pred_fallthru
      _
    %165 = vsyncpa [#allocation4], 1
    %166 = vsyncpa [#allocation7], 1
    %167 = vsyncpa [#allocation5], 1

</llo_original>
